<compile_context>
chip_gen: v7x
topology: tpu7x:2x2x1
jax: 0.10.0
libtpu: 0.0.40
codegen_flags: <defaults>
</compile_context>

<pallas_src>
import jax
import jax.numpy as jnp
from jax import lax
from jax.experimental import pallas as pl
from jax.experimental.pallas import tpu as pltpu

_EPS = 1e-12            # F.normalize default eps
_EPS_SQ = _EPS * _EPS   # clamp on sum-of-squares == clamp on norm


def _round_up(n, m):
    return ((n + m - 1) // m) * m


def _cosine_kernel(x_ref, wt_ref, inv_xn_ref, col_scale_ref, col_bias_ref,
                   o_ref, acc_ref):
    """Grid = (class tiles j, batch tiles i, feature tiles k); k innermost."""
    k = pl.program_id(2)

    @pl.when(k == 0)
    def _():
        acc_ref[...] = jnp.zeros_like(acc_ref)

    # MXU matmul in native dtype (bf16 stays bf16), f32 accumulation.
    acc_ref[...] += jnp.dot(
        x_ref[...], wt_ref[...], preferred_element_type=jnp.float32
    )

    @pl.when(k == pl.num_programs(2) - 1)
    def _():
        # Factorized, divide-free epilogue:
        #   out = (x @ w^T) * (1/||x||) * (scale/||w||) + scale*bias
        out = (acc_ref[...] * inv_xn_ref[...] * col_scale_ref[...]
               + col_bias_ref[...])
        o_ref[...] = out.astype(o_ref.dtype)


def cosine_classifier_forward(x, weight, bias, scale=30.0, *,
                              tm_max=256, tn_max=512, tk_max=1024):
    """x: (B, D), weight: (C, D), bias: (C,) -> (B, C)."""
    B, D = x.shape
    C, Dw = weight.shape
    assert D == Dw, "feature dims must match"

    itemsize = jnp.dtype(x.dtype).itemsize
    # bf16/fp8 MXUs on v6e/v7x are 256-wide; 128 is enough for f32.
    granule = 256 if itemsize < 4 else 128

    tm = min(tm_max, _round_up(B, 8))
    tn = min(tn_max, _round_up(C, granule))
    tk = min(tk_max, _round_up(D, granule))

    B_pad = _round_up(B, tm)
    C_pad = _round_up(C, tn)
    D_pad = _round_up(D, tk)

    # ---- Hoisted normalization factors (computed once, in f32, unpadded). ----
    xs = jnp.sum(jnp.square(x.astype(jnp.float32)), axis=-1, keepdims=True)
    inv_xn = lax.rsqrt(jnp.maximum(xs, _EPS_SQ))                         # (B, 1)
    ws = jnp.sum(jnp.square(weight.astype(jnp.float32)), axis=-1)
    col_scale = (jnp.float32(scale)
                 * lax.rsqrt(jnp.maximum(ws, _EPS_SQ))).reshape(1, C)    # (1, C)
    col_bias = (jnp.float32(scale) * bias.astype(jnp.float32)).reshape(1, C)

    # ---- Zero-pad to tile multiples (exact for both matmul and epilogue). ----
    xp = jnp.pad(x, ((0, B_pad - B), (0, D_pad - D)))
    wtp = jnp.pad(weight, ((0, C_pad - C), (0, D_pad - D))).T            # (D_pad, C_pad)
    inv_xn_p = jnp.pad(inv_xn, ((0, B_pad - B), (0, 0)))
    col_scale_p = jnp.pad(col_scale, ((0, 0), (0, C_pad - C)))
    col_bias_p = jnp.pad(col_bias, ((0, 0), (0, C_pad - C)))

    # Grid: class tiles (outer), batch tiles (middle), feature tiles (inner).
    # Weight block index is constant along the batch axis -> the big C x D matrix
    # is DMA'd from HBM once; only the small x / out tiles are re-streamed.
    grid = (C_pad // tn, B_pad // tm, D_pad // tk)

    out = pl.pallas_call(
        _cosine_kernel,
        out_shape=jax.ShapeDtypeStruct((B_pad, C_pad), x.dtype),
        grid=grid,
        in_specs=[
            pl.BlockSpec((tm, tk), lambda j, i, k: (i, k)),   # x tile
            pl.BlockSpec((tk, tn), lambda j, i, k: (k, j)),   # w^T tile (K, N)
            pl.BlockSpec((tm, 1), lambda j, i, k: (i, 0)),    # 1/||x||  (f32)
            pl.BlockSpec((1, tn), lambda j, i, k: (0, j)),    # scale/||w|| (f32)
            pl.BlockSpec((1, tn), lambda j, i, k: (0, j)),    # scale*bias (f32)
        ],
        out_specs=pl.BlockSpec((tm, tn), lambda j, i, k: (i, j)),
        scratch_shapes=[pltpu.VMEM((tm, tn), jnp.float32)],
        compiler_params=pltpu.CompilerParams(
            dimension_semantics=("parallel", "parallel", "arbitrary"),
            vmem_limit_bytes=32 * 1024 * 1024,   # safe on v5e/v6e/v7x
        ),
        cost_estimate=pl.CostEstimate(
            flops=2 * B_pad * C_pad * D_pad,
            transcendentals=0,
            bytes_accessed=(B_pad * D_pad + C_pad * D_pad) * itemsize
            + B_pad * C_pad * itemsize,
        ),
    )(xp, wtp, inv_xn_p, col_scale_p, col_bias_p)

    return out[:B, :C]


def _reference(x, weight, bias, scale=30.0):
    xn = x / jnp.maximum(jnp.linalg.norm(x, axis=-1, keepdims=True), _EPS)
    wn = weight / jnp.maximum(jnp.linalg.norm(weight, axis=-1, keepdims=True), _EPS)
    return (xn @ wn.T + bias) * scale


if __name__ == "__main__":
    key = jax.random.PRNGKey(0)
    kx, kw = jax.random.split(key)

    B, feat_dim, num_classes = 8, 32, 16
    scale = 30.0

    # Deterministic parameter init mirroring the module's __init__:
    # uniform(-1, 1), renorm rows to max L2 norm 1e-5, multiply by 1e5
    # (i.e. rows end up with norm <= 1).
    w_raw = jax.random.uniform(kw, (num_classes, feat_dim), dtype=jnp.float32,
                               minval=-1.0, maxval=1.0)
    row_norm = jnp.linalg.norm(w_raw, axis=-1, keepdims=True)
    renorm_factor = jnp.minimum(1.0, 1e-5 / jnp.maximum(row_norm, 1e-20))
    weight = w_raw * renorm_factor * 1e5
    bias = jnp.zeros((num_classes,), dtype=jnp.float32)

    x = jax.random.normal(kx, (B, feat_dim), dtype=jnp.float32)

    out = cosine_classifier_forward(x, weight, bias, scale)
    out = jax.block_until_ready(out)

    ref = _reference(x, weight, bias, scale)
    assert out.shape == (B, num_classes)
    assert jnp.allclose(out, ref, atol=1e-4, rtol=1e-4), "mismatch vs reference"

    print("KERNEL_OK")
</pallas_src>

<mosaic_0001>
module attributes {stable_mosaic.version = 11 : i64} {
  func.func @_cosine_kernel(%arg0: i32, %arg1: i32, %arg2: i32, %arg3: memref<8x128xf32, #tpu.memory_space<vmem>>, %arg4: memref<128x128xf32, #tpu.memory_space<vmem>>, %arg5: memref<8x1xf32, #tpu.memory_space<vmem>>, %arg6: memref<1x128xf32, #tpu.memory_space<vmem>>, %arg7: memref<1x128xf32, #tpu.memory_space<vmem>>, %arg8: memref<8x128xf32, #tpu.memory_space<vmem>>, %arg9: memref<8x128xf32, #tpu.memory_space<vmem>>) attributes {dimension_semantics = [#tpu.dimension_semantics<parallel>, #tpu.dimension_semantics<parallel>, #tpu.dimension_semantics<arbitrary>], iteration_bounds = array<i64: 1, 1, 1>, scalar_prefetch = 0 : i64, scratch_operands = 1 : i64, tpu.core_type = #tpu.core_type<tc>, window_params = [{transform_indices = @transform_0, window_bounds = array<i64: 8, 128>}, {transform_indices = @transform_1, window_bounds = array<i64: 128, 128>}, {transform_indices = @transform_2, window_bounds = array<i64: 8, 1>}, {transform_indices = @transform_3, window_bounds = array<i64: 1, 128>}, {transform_indices = @transform_4, window_bounds = array<i64: 1, 128>}, {transform_indices = @transform_5, window_bounds = array<i64: 8, 128>}]} {
    %c0_i32 = arith.constant 0 : i32
    %0 = arith.cmpi eq, %arg2, %c0_i32 : i32
    %1 = arith.extui %0 : i1 to i32
    %c0_i32_0 = arith.constant 0 : i32
    %2 = arith.cmpi ne, %1, %c0_i32_0 : i32
    scf.if %2 {
      %cst_10 = arith.constant 0.000000e+00 : f32
      %12 = vector.broadcast %cst_10 : f32 to vector<8x128xf32>
      %c0_11 = arith.constant 0 : index
      %c0_12 = arith.constant 0 : index
      %13 = vector.load %arg9[%c0_11, %c0_12] : memref<8x128xf32, #tpu.memory_space<vmem>>, vector<8x128xf32>
      tpu.vector_store %arg9[%c0_11, %c0_12], %12 {strides = array<i32>} : memref<8x128xf32, #tpu.memory_space<vmem>>, vector<8x128xf32>,
    } else {
    }
    %c0 = arith.constant 0 : index
    %c0_1 = arith.constant 0 : index
    %3 = vector.load %arg9[%c0, %c0_1] : memref<8x128xf32, #tpu.memory_space<vmem>>, vector<8x128xf32>
    %c0_2 = arith.constant 0 : index
    %c0_3 = arith.constant 0 : index
    %4 = vector.load %arg3[%c0_2, %c0_3] : memref<8x128xf32, #tpu.memory_space<vmem>>, vector<8x128xf32>
    %c0_4 = arith.constant 0 : index
    %c0_5 = arith.constant 0 : index
    %5 = vector.load %arg4[%c0_4, %c0_5] : memref<128x128xf32, #tpu.memory_space<vmem>>, vector<128x128xf32>
    %cst = arith.constant dense<0.000000e+00> : vector<8x128xf32>
    %6 = tpu.matmul %4, %5, %cst {dimension_numbers = #tpu.dot_dimension_numbers<[1], [0], [0], [1], [0, 0, 1, 1], [], []>} : vector<8x128xf32>, vector<128x128xf32>, vector<8x128xf32> -> vector<8x128xf32>
    %7 = arith.addf %3, %6 : vector<8x128xf32>
    %c0_6 = arith.constant 0 : index
    %c0_7 = arith.constant 0 : index
    %8 = vector.load %arg9[%c0_6, %c0_7] : memref<8x128xf32, #tpu.memory_space<vmem>>, vector<8x128xf32>
    tpu.vector_store %arg9[%c0_6, %c0_7], %7 {strides = array<i32>} : memref<8x128xf32, #tpu.memory_space<vmem>>, vector<8x128xf32>,
    %c0_i32_8 = arith.constant 0 : i32
    %9 = arith.cmpi eq, %arg2, %c0_i32_8 : i32
    %10 = arith.extui %9 : i1 to i32
    %c0_i32_9 = arith.constant 0 : i32
    %11 = arith.cmpi ne, %10, %c0_i32_9 : i32
    scf.if %11 {
      %c0_10 = arith.constant 0 : index
      %c0_11 = arith.constant 0 : index
      %12 = vector.load %arg9[%c0_10, %c0_11] : memref<8x128xf32, #tpu.memory_space<vmem>>, vector<8x128xf32>
      %c0_12 = arith.constant 0 : index
      %c0_13 = arith.constant 0 : index
      %13 = vector.load %arg5[%c0_12, %c0_13] : memref<8x1xf32, #tpu.memory_space<vmem>>, vector<8x1xf32>
      %14 = vector.broadcast %13 : vector<8x1xf32> to vector<8x128xf32>
      %15 = arith.mulf %12, %14 : vector<8x128xf32>
      %c0_14 = arith.constant 0 : index
      %c0_15 = arith.constant 0 : index
      %16 = vector.load %arg6[%c0_14, %c0_15] : memref<1x128xf32, #tpu.memory_space<vmem>>, vector<1x128xf32>
      %17 = vector.broadcast %16 : vector<1x128xf32> to vector<8x128xf32>
      %18 = arith.mulf %15, %17 : vector<8x128xf32>
      %c0_16 = arith.constant 0 : index
      %c0_17 = arith.constant 0 : index
      %19 = vector.load %arg7[%c0_16, %c0_17] : memref<1x128xf32, #tpu.memory_space<vmem>>, vector<1x128xf32>
      %20 = vector.broadcast %19 : vector<1x128xf32> to vector<8x128xf32>
      %21 = arith.addf %18, %20 : vector<8x128xf32>
      %c0_18 = arith.constant 0 : index
      %c0_19 = arith.constant 0 : index
      %22 = vector.load %arg8[%c0_18, %c0_19] : memref<8x128xf32, #tpu.memory_space<vmem>>, vector<8x128xf32>
      tpu.vector_store %arg8[%c0_18, %c0_19], %21 {strides = array<i32>} : memref<8x128xf32, #tpu.memory_space<vmem>>, vector<8x128xf32>,
    } else {
    }
    return
  }
  func.func @transform_0(%arg0: i32, %arg1: i32, %arg2: i32) -> (i32, i32) {
    %c0_i32 = arith.constant 0 : i32
    return %arg1, %arg2 : i32, i32
  }
  func.func @transform_1(%arg0: i32, %arg1: i32, %arg2: i32) -> (i32, i32) {
    %c0_i32 = arith.constant 0 : i32
    return %arg2, %arg0 : i32, i32
  }
  func.func @transform_2(%arg0: i32, %arg1: i32, %arg2: i32) -> (i32, i32) {
    %c0_i32 = arith.constant 0 : i32
    %c0_i32_0 = arith.constant 0 : i32
    return %arg1, %c0_i32 : i32, i32
  }
  func.func @transform_3(%arg0: i32, %arg1: i32, %arg2: i32) -> (i32, i32) {
    %c0_i32 = arith.constant 0 : i32
    %c0_i32_0 = arith.constant 0 : i32
    return %c0_i32, %arg0 : i32, i32
  }
  func.func @transform_4(%arg0: i32, %arg1: i32, %arg2: i32) -> (i32, i32) {
    %c0_i32 = arith.constant 0 : i32
    %c0_i32_0 = arith.constant 0 : i32
    return %c0_i32, %arg0 : i32, i32
  }
  func.func @transform_5(%arg0: i32, %arg1: i32, %arg2: i32) -> (i32, i32) {
    %c0_i32 = arith.constant 0 : i32
    return %arg1, %arg0 : i32, i32
  }
}

</mosaic_0001>

<llo_original>
// kernel: tpu_custom_call.1
$region0: #{tpu_custom_call.1}
  #allocation0 [shape = 'u32[]', space=smem, size = 0x4, offset = 0x4, fixed_abs, tag = 'smem constant byte address 0x4 - core index']
  #allocation1 [shape = 'u32[144,128]{1,0:T(1,128)}', space=vmem, size = 0x12000, scoped, tag = 'internal scratch']
  #allocation2 [shape = 'f32[8,128]{1,0:T(8,128)}', space=vmem, size = 0x1000, scoped, tag = 'scratch operand']
  %s0 = inlined_call_operand.vmem [shape: f32[8,128], index: 0, kind: input, shape index: {}]
  %s1 = inlined_call_operand.hbm [shape: f32[128,128], index: 1, kind: input, shape index: {}]
  %s2 = inlined_call_operand.vmem [shape: f32[8,1], index: 2, kind: input, shape index: {}]
  %s3 = inlined_call_operand.vmem [shape: f32[1,128], index: 3, kind: input, shape index: {}]
  %s4 = inlined_call_operand.vmem [shape: f32[1,128], index: 4, kind: input, shape index: {}]
  %s5 = inlined_call_operand.hbm [shape: f32[8,128], index: 5, kind: output, shape index: {}]
  %s6 = sld [smem:[#allocation0]]
  $region42: #{tpu_custom_call.1} parent=0
    _
  %s8 = ssub.s32 1, %s6
  %s9 = scalar_select 0, %s8, %s6
  $region1: #{tpu_custom_call.1} parent=0
    #allocation3 [shape = 'u8[65536]{0}', space=vmem, size = 0x10000, scoped, tag = 'input window, operand 1, single buffered']
    #allocation4 [shape = 's32[1]{0}', space=sflag, size = 0x4, scoped, tag = 'scoped memory for tpu_custom_call.1']
    #allocation5 [shape = 's32[1]{0}', space=sflag, size = 0x4, scoped, tag = 'scoped memory for tpu_custom_call.1']
    #allocation6 [shape = 'u8[4096]{0}', space=vmem, size = 0x1000, scoped, tag = 'output window, operand 0, single buffered']
    %10 = vsyncpa [#allocation4], 0
    %11 = vsyncpa [#allocation5], 0
    // Predicated region
    $region2: #{tpu_custom_call.1} parent=1 // pred_check
      _
    $region3: #{tpu_custom_call.1} parent=1 // pred_check_branch
      %13 = sbr.rel (0) target = $region5
    $region4: #{tpu_custom_call.1} parent=1 // pred_region
      _
    $region5: #{tpu_custom_call.1} parent=1 // pred_fallthru
      _
    // Predicated region
    $region6: #{tpu_custom_call.1} parent=1 // pred_check
      _
    $region7: #{tpu_custom_call.1} parent=1 // pred_check_branch
      %15 = sbr.rel (0) target = $region9
    $region8: #{tpu_custom_call.1} parent=1 // pred_region
      %s17 = ssub.s32 2048, 2048
      %18 = vsyncadd [#allocation4], %s17
      %s19 = sshll.u32 [#allocation3], 4
      %s20 = int_to_ptr.vmem [resolvable:$true] %s19
      %25 = dma.hbm_to_vmem [thread:$0]  %s1, 2048, %s20, [#allocation4], 128, 128, 8
    $region9: #{tpu_custom_call.1} parent=1 // pred_fallthru
      _
    // Predicated region
    $region10: #{tpu_custom_call.1} parent=1 // pred_check
      _
    $region11: #{tpu_custom_call.1} parent=1 // pred_check_branch
      %27 = sbr.rel (0) target = $region13
    $region12: #{tpu_custom_call.1} parent=1 // pred_region
      _
    $region13: #{tpu_custom_call.1} parent=1 // pred_fallthru
      _
    // Predicated region
    $region14: #{tpu_custom_call.1} parent=1 // pred_check
      _
    $region15: #{tpu_custom_call.1} parent=1 // pred_check_branch
      %29 = sbr.rel (0) target = $region17
    $region16: #{tpu_custom_call.1} parent=1 // pred_region
      _
    $region17: #{tpu_custom_call.1} parent=1 // pred_fallthru
      _
    // Predicated region
    $region18: #{tpu_custom_call.1} parent=1 // pred_check
      _
    $region19: #{tpu_custom_call.1} parent=1 // pred_check_branch
      %31 = sbr.rel (0) target = $region21
    $region20: #{tpu_custom_call.1} parent=1 // pred_region
      _
    $region21: #{tpu_custom_call.1} parent=1 // pred_fallthru
      _
    // Predicated region
    $region22: #{tpu_custom_call.1} parent=1 // pred_check
      _
    $region23: #{tpu_custom_call.1} parent=1 // pred_check_branch
      %33 = sbr.rel (0) target = $region25
    $region24: #{tpu_custom_call.1} parent=1 // pred_region
      %34 = dma.done [#allocation4], 2048
    $region25: #{tpu_custom_call.1} parent=1 // pred_fallthru
      _
    %p35 = scmp.eq.s32.totalorder 0, 0
    // Predicated region
    $region26: #{tpu_custom_call.1} parent=1 // pred_check
      %p36 = pneg %p35
    $region27: #{tpu_custom_call.1} parent=1 // pred_check_branch
      %38 = sbr.rel (%p36) target = $region29
    $region28: #{tpu_custom_call.1} parent=1 // pred_region
      %39 = vst [vmem:[#allocation2] sm:$0xff] 0.0
    $region29: #{tpu_custom_call.1} parent=1 // pred_fallthru
      _
    %v40 = vld [vmem:[#allocation2] sm:$0xff]
    %v41 = vld [vmem:[%s0] sm:$0xff]
    %v42 = vld [vmem:[#allocation3] sm:$0xff]
    %v43 = vld [vmem:[#allocation3 + $0x8] sm:$0xff]
    %v44 = vld [vmem:[#allocation3 + $0x10] sm:$0xff]
    %v45 = vld [vmem:[#allocation3 + $0x18] sm:$0xff]
    %v46 = vld [vmem:[#allocation3 + $0x20] sm:$0xff]
    %v47 = vld [vmem:[#allocation3 + $0x28] sm:$0xff]
    %v48 = vld [vmem:[#allocation3 + $0x30] sm:$0xff]
    %v49 = vld [vmem:[#allocation3 + $0x38] sm:$0xff]
    %v50 = vld [vmem:[#allocation3 + $0x40] sm:$0xff]
    %v51 = vld [vmem:[#allocation3 + $0x48] sm:$0xff]
    %v52 = vld [vmem:[#allocation3 + $0x50] sm:$0xff]
    %v53 = vld [vmem:[#allocation3 + $0x58] sm:$0xff]
    %v54 = vld [vmem:[#allocation3 + $0x60] sm:$0xff]
    %v55 = vld [vmem:[#allocation3 + $0x68] sm:$0xff]
    %v56 = vld [vmem:[#allocation3 + $0x70] sm:$0xff]
    %v57 = vld [vmem:[#allocation3 + $0x78] sm:$0xff]
    %58 = vmatprep.subr.mxu0 0.0
    %59 = vmatpush1.msra.mxu0 %v42
    %60 = vmatprep.subr.mxu0 0.0
    %61 = vmatpush1.msra.mxu0 %v43
    %62 = vmatprep.subr.mxu0 0.0
    %63 = vmatpush1.msra.mxu0 %v44
    %64 = vmatprep.subr.mxu0 0.0
    %65 = vmatpush1.msra.mxu0 %v45
    %66 = vmatprep.subr.mxu0 0.0
    %67 = vmatpush1.msra.mxu0 %v46
    %68 = vmatprep.subr.mxu0 0.0
    %69 = vmatpush1.msra.mxu0 %v47
    %70 = vmatprep.subr.mxu0 0.0
    %71 = vmatpush1.msra.mxu0 %v48
    %72 = vmatprep.subr.mxu0 0.0
    %73 = vmatpush1.msra.mxu0 %v49
    %74 = vmatprep.subr.mxu0 0.0
    %75 = vmatpush1.msra.mxu0 %v50
    %76 = vmatprep.subr.mxu0 0.0
    %77 = vmatpush1.msra.mxu0 %v51
    %78 = vmatprep.subr.mxu0 0.0
    %79 = vmatpush1.msra.mxu0 %v52
    %80 = vmatprep.subr.mxu0 0.0
    %81 = vmatpush1.msra.mxu0 %v53
    %82 = vmatprep.subr.mxu0 0.0
    %83 = vmatpush1.msra.mxu0 %v54
    %84 = vmatprep.subr.mxu0 0.0
    %85 = vmatpush1.msra.mxu0 %v55
    %86 = vmatprep.subr.mxu0 0.0
    %87 = vmatpush1.msra.mxu0 %v56
    %88 = vmatprep.subr.mxu0 0.0
    %89 = vmatpush1.msra.mxu0 %v57
    %90 = vmatprep.subr.mxu0 0.0
    %91 = vmatpush1.msra.mxu0 0.0
    %92 = vmatprep.subr.mxu0 0.0
    %93 = vmatpush1.msra.mxu0 0.0
    %94 = vmatprep.subr.mxu0 0.0
    %95 = vmatpush1.msra.mxu0 0.0
    %96 = vmatprep.subr.mxu0 0.0
    %97 = vmatpush1.msra.mxu0 0.0
    %98 = vmatprep.subr.mxu0 0.0
    %99 = vmatpush1.msra.mxu0 0.0
    %100 = vmatprep.subr.mxu0 0.0
    %101 = vmatpush1.msra.mxu0 0.0
    %102 = vmatprep.subr.mxu0 0.0
    %103 = vmatpush1.msra.mxu0 0.0
    %104 = vmatprep.subr.mxu0 0.0
    %105 = vmatpush1.msra.mxu0 0.0
    %106 = vmatprep.subr.mxu0 0.0
    %107 = vmatpush1.msra.mxu0 0.0
    %108 = vmatprep.subr.mxu0 0.0
    %109 = vmatpush1.msra.mxu0 0.0
    %110 = vmatprep.subr.mxu0 0.0
    %111 = vmatpush1.msra.mxu0 0.0
    %112 = vmatprep.subr.mxu0 0.0
    %113 = vmatpush1.msra.mxu0 0.0
    %114 = vmatprep.subr.mxu0 0.0
    %115 = vmatpush1.msra.mxu0 0.0
    %116 = vmatprep.subr.mxu0 0.0
    %117 = vmatpush1.msra.mxu0 0.0
    %118 = vmatprep.subr.mxu0 0.0
    %119 = vmatpush1.msra.mxu0 0.0
    %120 = vmatprep.subr.mxu0 0.0
    %121 = vmatpush1.msra.mxu0 0.0
    %122 = vmatprep.mubr.f32.mxu0 0.0
    %123 = vmatmul.mubr.f32.gmra.mrb[0].mxu0 %v41
    %v124 = vpop.f32.mrb[0].mxu0
    %v125 = vadd.f32 0.0, %v124
    %v126 = vpop.f32.mrb[0].mxu0
    %127 = vdwg.mxu0
    %v128 = vadd.f32 %v40, %v125
    %129 = vst [vmem:[#allocation2] sm:$0xff] %v128
    // Predicated region
    $region30: #{tpu_custom_call.1} parent=1 // pred_check
      %p130 = pneg %p35
    $region31: #{tpu_custom_call.1} parent=1 // pred_check_branch
      %132 = sbr.rel (%p130) target = $region33
    $region32: #{tpu_custom_call.1} parent=1 // pred_region
      %v133 = vld [vmem:[#allocation2] sm:$0xff]
      %v134 = vld [vmem:[%s2] sm:$0xff]
      %136 = vset.pattern.permute.xlu0 0
      %137 = vperm.xlu0 %136, %v134
      %v138 = vpop.permute.xlu0 %137
      %v140 = vmul.f32 %v133, %v138
      %v141 = vld [vmem:[%s3] sm:$0x1]
      %v143 = vlaneseq
      %v144 = vshrl.u32 %v143, 7
      %v145 = vsub.s32 0, %v144
      %v146 = vrot.slane %v141, %v145
      %v148 = vmul.f32 %v140, %v146
      %v149 = vld [vmem:[%s4] sm:$0x1]
      %v151 = vlaneseq
      %v152 = vshrl.u32 %v151, 7
      %v153 = vsub.s32 0, %v152
      %v154 = vrot.slane %v149, %v153
      %v156 = vadd.f32 %v148, %v154
      %157 = vst [vmem:[#allocation6] sm:$0xff] %v156
    $region33: #{tpu_custom_call.1} parent=1 // pred_fallthru
      _
    // Predicated region
    $region34: #{tpu_custom_call.1} parent=1 // pred_check
      _
    $region35: #{tpu_custom_call.1} parent=1 // pred_check_branch
      %159 = sbr.rel (0) target = $region37
    $region36: #{tpu_custom_call.1} parent=1 // pred_region
      %s161 = ssub.s32 128, 128
      %162 = vsyncadd [#allocation5], %s161
      %s164 = sshll.u32 [#allocation6], 4
      %s165 = int_to_ptr.vmem [resolvable:$true] %s164
      %167 = dma.vmem_to_hbm [thread:$0]  %s165, 128, %s5, [#allocation5]
    $region37: #{tpu_custom_call.1} parent=1 // pred_fallthru
      _
    // Predicated region
    $region38: #{tpu_custom_call.1} parent=1 // pred_check
      _
    $region39: #{tpu_custom_call.1} parent=1 // pred_check_branch
      %169 = sbr.rel (0) target = $region41
    $region40: #{tpu_custom_call.1} parent=1 // pred_region
      %170 = dma.done [#allocation5], 128
    $region41: #{tpu_custom_call.1} parent=1 // pred_fallthru
      _
    %171 = vsyncpa [#allocation4], 1
    %172 = vsyncpa [#allocation5], 1

</llo_original>
